<compile_context>
chip_gen: v7x
topology: tpu7x:2x2x1
jax: 0.10.0
libtpu: 0.0.40
codegen_flags: <defaults>
</compile_context>

<pallas_src>
import jax
import jax.numpy as jnp
from jax.experimental import pallas as pl
from jax.experimental.pallas import tpu as pltpu

FEAT = 128        # stands for 512 * Bottleneck.expansion = 2048
PLANES = 32       # stands for 512 (bottleneck group width)
REDUCE_DIM = 32   # reduce_dim argument
NUM_CLASSES = 5   # num_classes argument
NPAD = 128        # lane-dense padded width of the final head output


# ----------------------------------------------------------------------------
# Fused Pallas kernel: whole CnnHead2 (post-backbone-GAP) in one call
# ----------------------------------------------------------------------------
def _fused_head_kernel(f1_ref, f2_ref,
                       a1w_ref, a1b_ref, a2w_ref, a2b_ref,
                       fc0wa_ref, fc0wb_ref, fc0b_ref,
                       c1w_ref, c1b_ref, c2w_ref, c2b_ref, c3w_ref, c3b_ref,
                       sprev_ref, snext_ref, pool_ref,
                       headw_ref, headb_ref,
                       o_ref):
    f32 = jnp.float32
    bf16 = jnp.bfloat16

    # --- stand-in backbone linears (arch / arch2): bf16 MXU, f32 accum -------
    fea1 = (jnp.dot(f1_ref[...].astype(bf16), a1w_ref[...],
                    preferred_element_type=f32) + a1b_ref[...])
    fea2 = (jnp.dot(f2_ref[...].astype(bf16), a2w_ref[...],
                    preferred_element_type=f32) + a2b_ref[...])

    # --- fc0 on cat([fea1, fea2], dim=1): split-weight form, no concat -------
    fmap = (jnp.dot(fea1.astype(bf16), fc0wa_ref[...], preferred_element_type=f32)
            + jnp.dot(fea2.astype(bf16), fc0wb_ref[...], preferred_element_type=f32)
            + fc0b_ref[...])                                   # (M, FEAT) == conv_in

    # --- Bottleneck conv1 (1x1) + folded BN + ReLU ---------------------------
    h1 = jnp.maximum(
        jnp.dot(fmap.astype(bf16), c1w_ref[...], preferred_element_type=f32)
        + c1b_ref[...], 0.0)                                   # (M, PLANES)
    h1_bf = h1.astype(bf16)

    # --- conv2: 3x3 collapses exactly to a 3-tap conv over the sequence ------
    # Batch-aware +-1 sequence shifts via tiny 0/1 shift matrices on the MXU
    # (exact for bf16 operands); taps accumulate in f32.  No padded HBM copy,
    # no per-batch grid.
    prev = jnp.dot(sprev_ref[...], h1_bf, preferred_element_type=f32).astype(bf16)
    nxt = jnp.dot(snext_ref[...], h1_bf, preferred_element_type=f32).astype(bf16)
    h2 = (jnp.dot(prev, c2w_ref[0], preferred_element_type=f32)
          + jnp.dot(h1_bf, c2w_ref[1], preferred_element_type=f32)
          + jnp.dot(nxt, c2w_ref[2], preferred_element_type=f32)
          + c2b_ref[...])
    h2 = jnp.maximum(h2, 0.0)                                  # (M, PLANES)

    # --- conv3 (1x1) + folded BN ---------------------------------------------
    h3 = (jnp.dot(h2.astype(bf16), c3w_ref[...], preferred_element_type=f32)
          + c3b_ref[...])                                      # (M, FEAT)

    # --- identity residual + ReLU, GAP over seq (pool matrix), fc2·fc head ---
    z = jnp.maximum(h3 + fmap, 0.0)                            # f32 epilogue
    pooled = jnp.dot(pool_ref[...], z, preferred_element_type=f32)   # (B, FEAT)
    out = (jnp.dot(pooled.astype(bf16), headw_ref[...],
                   preferred_element_type=f32) + headb_ref[...])     # (B, NPAD)
    o_ref[...] = out.astype(o_ref.dtype)                       # lane-dense store


# ----------------------------------------------------------------------------
# One-time parameter preparation (hoisted out of the forward path)
# ----------------------------------------------------------------------------
def fold_bn(w, bn, eps=1e-5):
    """Fold eval-mode BatchNorm into the preceding bias-free conv weight.
    w has output channels on its last axis; returns (w', b')."""
    gamma, beta, mean, var = bn
    scale = gamma / jnp.sqrt(var + eps)
    return w * scale, beta - mean * scale


def prepare_params(params, B, T):
    """BN folding, fc2·fc folding, fc0 split, head lane-padding, bf16 casts,
    shift/pool matrices.  Run once at load time, NOT per forward."""
    M = B * T
    bf16 = jnp.bfloat16

    w1, b1 = fold_bn(params['conv1_w'], params['bn1'])
    w2, b2 = fold_bn(params['conv2_w'], params['bn2'])
    w3, b3 = fold_bn(params['conv3_w'], params['bn3'])

    # fc2 -> (dropout inactive) -> fc  folds into one affine map (exact at inference)
    head_w = params['fc2_w'] @ params['fc_w']                      # (FEAT, NUM_CLASSES)
    head_b = params['fc2_b'] @ params['fc_w'] + params['fc_b']     # (NUM_CLASSES,)
    head_w = jnp.pad(head_w, ((0, 0), (0, NPAD - NUM_CLASSES)))    # lane-dense
    head_b = jnp.pad(head_b, (0, NPAD - NUM_CLASSES))

    # batch-aware +-1 sequence-shift matrices and the GAP pooling matrix
    rows = jnp.arange(M)
    t = rows % T
    sprev = ((rows[:, None] - 1 == rows[None, :]) & (t > 0)[:, None]).astype(bf16)
    snext = ((rows[:, None] + 1 == rows[None, :]) & (t < T - 1)[:, None]).astype(bf16)
    pool = ((rows[None, :] // T) == jnp.arange(B)[:, None]).astype(jnp.float32) / T

    def b2d(b):
        return b.reshape(1, -1).astype(jnp.float32)

    return {
        'a1w': params['arch1_w'].astype(bf16), 'a1b': b2d(params['arch1_b']),
        'a2w': params['arch2_w'].astype(bf16), 'a2b': b2d(params['arch2_b']),
        'fc0wa': params['fc0_w'][:FEAT].astype(bf16),
        'fc0wb': params['fc0_w'][FEAT:].astype(bf16),
        'fc0b': b2d(params['fc0_b']),
        'c1w': w1.astype(bf16), 'c1b': b2d(b1),
        'c2w': w2.astype(bf16), 'c2b': b2d(b2),
        'c3w': w3.astype(bf16), 'c3b': b2d(b3),
        'sprev': sprev, 'snext': snext, 'pool': pool,
        'headw': head_w.astype(bf16), 'headb': b2d(head_b),
    }


def init_params(key, c_img, feat, planes, reduce_dim, num_classes):
    keys = iter(jax.random.split(key, 32))

    def n(shape, s=0.05):
        return s * jax.random.normal(next(keys), shape, jnp.float32)

    def bn(c):
        return (1.0 + 0.1 * jax.random.normal(next(keys), (c,), jnp.float32),  # gamma
                0.1 * jax.random.normal(next(keys), (c,), jnp.float32),        # beta
                0.1 * jax.random.normal(next(keys), (c,), jnp.float32),        # running_mean
                0.5 + jax.random.uniform(next(keys), (c,), jnp.float32))       # running_var

    return {
        'arch1_w': n((c_img, feat), 0.2), 'arch1_b': n((feat,), 0.1),
        'arch2_w': n((c_img, feat), 0.2), 'arch2_b': n((feat,), 0.1),
        'fc0_w': n((2 * feat, feat)), 'fc0_b': n((feat,), 0.1),
        'conv1_w': n((feat, planes)), 'bn1': bn(planes),        # 1x1
        'conv2_w': n((3, planes, planes)), 'bn2': bn(planes),   # 3x3 (effective 3x1)
        'conv3_w': n((planes, feat)), 'bn3': bn(feat),          # 1x1
        'fc2_w': n((feat, reduce_dim)), 'fc2_b': n((reduce_dim,), 0.1),
        'fc_w': n((reduce_dim, num_classes)), 'fc_b': n((num_classes,), 0.1),
    }


# ----------------------------------------------------------------------------
# CnnHead2.forward
# ----------------------------------------------------------------------------
def cnn_head2_forward(prep, xs, xs2):
    B, T, C, H, W = xs.shape
    M = B * T
    # stand-in backbone spatial GAP (cheap XLA reduction); the backbone linear
    # part is fused into the Pallas kernel below.
    f1 = jnp.mean(xs.reshape(M, C, H * W), axis=-1)            # (B*T, C)
    f2 = jnp.mean(xs2.reshape(M, C, H * W), axis=-1)

    vmem = pl.BlockSpec(memory_space=pltpu.MemorySpace.VMEM)
    out_pad = pl.pallas_call(
        _fused_head_kernel,
        out_shape=jax.ShapeDtypeStruct((B, NPAD), jnp.float32),
        in_specs=[vmem] * 20,
        out_specs=vmem,
    )(f1, f2,
      prep['a1w'], prep['a1b'], prep['a2w'], prep['a2b'],
      prep['fc0wa'], prep['fc0wb'], prep['fc0b'],
      prep['c1w'], prep['c1b'], prep['c2w'], prep['c2b'],
      prep['c3w'], prep['c3b'],
      prep['sprev'], prep['snext'], prep['pool'],
      prep['headw'], prep['headb'])
    return out_pad[:, :NUM_CLASSES]


# ----------------------------------------------------------------------------
# Pure-JAX f32 reference (independent of the kernel's shift/pool/fold tricks)
# ----------------------------------------------------------------------------
def _reference_forward(params, xs, xs2):
    B, T, C, H, W = xs.shape
    M = B * T
    f1 = jnp.mean(xs.reshape(M, C, H * W), axis=-1)
    f2 = jnp.mean(xs2.reshape(M, C, H * W), axis=-1)
    fea1 = f1 @ params['arch1_w'] + params['arch1_b']
    fea2 = f2 @ params['arch2_w'] + params['arch2_b']
    fea = jnp.concatenate([fea1, fea2], axis=-1)
    conv_in = (fea @ params['fc0_w'] + params['fc0_b']).reshape(B, T, FEAT)
    w1, b1 = fold_bn(params['conv1_w'], params['bn1'])
    h1 = jnp.maximum(conv_in @ w1 + b1, 0.0)
    w2, b2 = fold_bn(params['conv2_w'], params['bn2'])
    h1p = jnp.pad(h1, ((0, 0), (1, 1), (0, 0)))
    h2 = sum(jnp.einsum('bsc,cd->bsd', h1p[:, k:k + T], w2[k]) for k in range(3)) + b2
    h2 = jnp.maximum(h2, 0.0)
    w3, b3 = fold_bn(params['conv3_w'], params['bn3'])
    h3 = h2 @ w3 + b3
    z = jnp.maximum(h3 + conv_in, 0.0)
    pooled = jnp.mean(z, axis=1)
    out = pooled @ params['fc2_w'] + params['fc2_b']
    return out @ params['fc_w'] + params['fc_b']


if __name__ == "__main__":
    key = jax.random.PRNGKey(0)
    kx, kx2, kp = jax.random.split(key, 3)

    B, T, C, H, W = 2, 8, 4, 8, 8
    xs = jax.random.normal(kx, (B, T, C, H, W), jnp.float32)
    xs2 = jax.random.normal(kx2, (B, T, C, H, W), jnp.float32)

    params = init_params(kp, C, FEAT, PLANES, REDUCE_DIM, NUM_CLASSES)
    prep = prepare_params(params, B, T)          # one-time folding / casting

    fwd = jax.jit(cnn_head2_forward)
    out = jax.block_until_ready(fwd(prep, xs, xs2))

    assert out.shape == (B, NUM_CLASSES)
    assert bool(jnp.all(jnp.isfinite(out)))

    ref = _reference_forward(params, xs, xs2)
    assert float(jnp.max(jnp.abs(out - ref))) < 5e-2, "kernel mismatch vs f32 reference"

    print("KERNEL_OK")
</pallas_src>

<mosaic_0001>
module attributes {stable_mosaic.version = 11 : i64} {
  func.func @_fused_head_kernel(%arg0: memref<16x4xf32, #tpu.memory_space<vmem>>, %arg1: memref<16x4xf32, #tpu.memory_space<vmem>>, %arg2: memref<4x128xbf16, #tpu.memory_space<vmem>>, %arg3: memref<1x128xf32, #tpu.memory_space<vmem>>, %arg4: memref<4x128xbf16, #tpu.memory_space<vmem>>, %arg5: memref<1x128xf32, #tpu.memory_space<vmem>>, %arg6: memref<128x128xbf16, #tpu.memory_space<vmem>>, %arg7: memref<128x128xbf16, #tpu.memory_space<vmem>>, %arg8: memref<1x128xf32, #tpu.memory_space<vmem>>, %arg9: memref<128x32xbf16, #tpu.memory_space<vmem>>, %arg10: memref<1x32xf32, #tpu.memory_space<vmem>>, %arg11: memref<3x32x32xbf16, #tpu.memory_space<vmem>>, %arg12: memref<1x32xf32, #tpu.memory_space<vmem>>, %arg13: memref<32x128xbf16, #tpu.memory_space<vmem>>, %arg14: memref<1x128xf32, #tpu.memory_space<vmem>>, %arg15: memref<16x16xbf16, #tpu.memory_space<vmem>>, %arg16: memref<16x16xbf16, #tpu.memory_space<vmem>>, %arg17: memref<2x16xf32, #tpu.memory_space<vmem>>, %arg18: memref<128x128xbf16, #tpu.memory_space<vmem>>, %arg19: memref<1x128xf32, #tpu.memory_space<vmem>>, %arg20: memref<2x128xf32, #tpu.memory_space<vmem>>) attributes {dimension_semantics = [], scalar_prefetch = 0 : i64, scratch_operands = 0 : i64, tpu.core_type = #tpu.core_type<tc>} {
    %c0 = arith.constant 0 : index
    %c0_0 = arith.constant 0 : index
    %0 = vector.load %arg0[%c0, %c0_0] : memref<16x4xf32, #tpu.memory_space<vmem>>, vector<16x4xf32>
    %1 = arith.truncf %0 : vector<16x4xf32> to vector<16x4xbf16>
    %c0_1 = arith.constant 0 : index
    %c0_2 = arith.constant 0 : index
    %2 = vector.load %arg2[%c0_1, %c0_2] : memref<4x128xbf16, #tpu.memory_space<vmem>>, vector<4x128xbf16>
    %cst = arith.constant dense<0.000000e+00> : vector<16x128xf32>
    %3 = tpu.matmul %1, %2, %cst {dimension_numbers = #tpu.dot_dimension_numbers<[1], [0], [0], [1], [0, 0, 1, 1], [], []>} : vector<16x4xbf16>, vector<4x128xbf16>, vector<16x128xf32> -> vector<16x128xf32>
    %c0_3 = arith.constant 0 : index
    %c0_4 = arith.constant 0 : index
    %4 = vector.load %arg3[%c0_3, %c0_4] : memref<1x128xf32, #tpu.memory_space<vmem>>, vector<1x128xf32>
    %5 = vector.broadcast %4 : vector<1x128xf32> to vector<16x128xf32>
    %6 = arith.addf %3, %5 : vector<16x128xf32>
    %c0_5 = arith.constant 0 : index
    %c0_6 = arith.constant 0 : index
    %7 = vector.load %arg1[%c0_5, %c0_6] : memref<16x4xf32, #tpu.memory_space<vmem>>, vector<16x4xf32>
    %8 = arith.truncf %7 : vector<16x4xf32> to vector<16x4xbf16>
    %c0_7 = arith.constant 0 : index
    %c0_8 = arith.constant 0 : index
    %9 = vector.load %arg4[%c0_7, %c0_8] : memref<4x128xbf16, #tpu.memory_space<vmem>>, vector<4x128xbf16>
    %cst_9 = arith.constant dense<0.000000e+00> : vector<16x128xf32>
    %10 = tpu.matmul %8, %9, %cst_9 {dimension_numbers = #tpu.dot_dimension_numbers<[1], [0], [0], [1], [0, 0, 1, 1], [], []>} : vector<16x4xbf16>, vector<4x128xbf16>, vector<16x128xf32> -> vector<16x128xf32>
    %c0_10 = arith.constant 0 : index
    %c0_11 = arith.constant 0 : index
    %11 = vector.load %arg5[%c0_10, %c0_11] : memref<1x128xf32, #tpu.memory_space<vmem>>, vector<1x128xf32>
    %12 = vector.broadcast %11 : vector<1x128xf32> to vector<16x128xf32>
    %13 = arith.addf %10, %12 : vector<16x128xf32>
    %14 = arith.truncf %6 : vector<16x128xf32> to vector<16x128xbf16>
    %c0_12 = arith.constant 0 : index
    %c0_13 = arith.constant 0 : index
    %15 = vector.load %arg6[%c0_12, %c0_13] : memref<128x128xbf16, #tpu.memory_space<vmem>>, vector<128x128xbf16>
    %cst_14 = arith.constant dense<0.000000e+00> : vector<16x128xf32>
    %16 = tpu.matmul %14, %15, %cst_14 {dimension_numbers = #tpu.dot_dimension_numbers<[1], [0], [0], [1], [0, 0, 1, 1], [], []>} : vector<16x128xbf16>, vector<128x128xbf16>, vector<16x128xf32> -> vector<16x128xf32>
    %17 = arith.truncf %13 : vector<16x128xf32> to vector<16x128xbf16>
    %c0_15 = arith.constant 0 : index
    %c0_16 = arith.constant 0 : index
    %18 = vector.load %arg7[%c0_15, %c0_16] : memref<128x128xbf16, #tpu.memory_space<vmem>>, vector<128x128xbf16>
    %cst_17 = arith.constant dense<0.000000e+00> : vector<16x128xf32>
    %19 = tpu.matmul %17, %18, %cst_17 {dimension_numbers = #tpu.dot_dimension_numbers<[1], [0], [0], [1], [0, 0, 1, 1], [], []>} : vector<16x128xbf16>, vector<128x128xbf16>, vector<16x128xf32> -> vector<16x128xf32>
    %20 = arith.addf %16, %19 : vector<16x128xf32>
    %c0_18 = arith.constant 0 : index
    %c0_19 = arith.constant 0 : index
    %21 = vector.load %arg8[%c0_18, %c0_19] : memref<1x128xf32, #tpu.memory_space<vmem>>, vector<1x128xf32>
    %22 = vector.broadcast %21 : vector<1x128xf32> to vector<16x128xf32>
    %23 = arith.addf %20, %22 : vector<16x128xf32>
    %24 = arith.truncf %23 : vector<16x128xf32> to vector<16x128xbf16>
    %c0_20 = arith.constant 0 : index
    %c0_21 = arith.constant 0 : index
    %25 = vector.load %arg9[%c0_20, %c0_21] : memref<128x32xbf16, #tpu.memory_space<vmem>>, vector<128x32xbf16>
    %cst_22 = arith.constant dense<0.000000e+00> : vector<16x32xf32>
    %26 = tpu.matmul %24, %25, %cst_22 {dimension_numbers = #tpu.dot_dimension_numbers<[1], [0], [0], [1], [0, 0, 1, 1], [], []>} : vector<16x128xbf16>, vector<128x32xbf16>, vector<16x32xf32> -> vector<16x32xf32>
    %c0_23 = arith.constant 0 : index
    %c0_24 = arith.constant 0 : index
    %27 = vector.load %arg10[%c0_23, %c0_24] : memref<1x32xf32, #tpu.memory_space<vmem>>, vector<1x32xf32>
    %28 = vector.broadcast %27 : vector<1x32xf32> to vector<16x32xf32>
    %29 = arith.addf %26, %28 : vector<16x32xf32>
    %cst_25 = arith.constant 0.000000e+00 : f32
    %30 = vector.broadcast %cst_25 : f32 to vector<16x32xf32>
    %31 = arith.maximumf %29, %30 : vector<16x32xf32>
    %32 = arith.truncf %31 : vector<16x32xf32> to vector<16x32xbf16>
    %c0_26 = arith.constant 0 : index
    %c0_27 = arith.constant 0 : index
    %33 = vector.load %arg15[%c0_26, %c0_27] : memref<16x16xbf16, #tpu.memory_space<vmem>>, vector<16x16xbf16>
    %cst_28 = arith.constant dense<0.000000e+00> : vector<16x32xf32>
    %34 = tpu.matmul %33, %32, %cst_28 {dimension_numbers = #tpu.dot_dimension_numbers<[1], [0], [0], [1], [0, 0, 1, 1], [], []>} : vector<16x16xbf16>, vector<16x32xbf16>, vector<16x32xf32> -> vector<16x32xf32>
    %35 = arith.truncf %34 : vector<16x32xf32> to vector<16x32xbf16>
    %c0_29 = arith.constant 0 : index
    %c0_30 = arith.constant 0 : index
    %36 = vector.load %arg16[%c0_29, %c0_30] : memref<16x16xbf16, #tpu.memory_space<vmem>>, vector<16x16xbf16>
    %cst_31 = arith.constant dense<0.000000e+00> : vector<16x32xf32>
    %37 = tpu.matmul %36, %32, %cst_31 {dimension_numbers = #tpu.dot_dimension_numbers<[1], [0], [0], [1], [0, 0, 1, 1], [], []>} : vector<16x16xbf16>, vector<16x32xbf16>, vector<16x32xf32> -> vector<16x32xf32>
    %38 = arith.truncf %37 : vector<16x32xf32> to vector<16x32xbf16>
    %c0_32 = arith.constant 0 : index
    %c0_33 = arith.constant 0 : index
    %c0_34 = arith.constant 0 : index
    %39 = vector.load %arg11[%c0_32, %c0_33, %c0_34] : memref<3x32x32xbf16, #tpu.memory_space<vmem>>, vector<1x32x32xbf16>
    %40 = vector.shape_cast %39 : vector<1x32x32xbf16> to vector<32x32xbf16>
    %cst_35 = arith.constant dense<0.000000e+00> : vector<16x32xf32>
    %41 = tpu.matmul %35, %40, %cst_35 {dimension_numbers = #tpu.dot_dimension_numbers<[1], [0], [0], [1], [0, 0, 1, 1], [], []>} : vector<16x32xbf16>, vector<32x32xbf16>, vector<16x32xf32> -> vector<16x32xf32>
    %c1 = arith.constant 1 : index
    %c0_36 = arith.constant 0 : index
    %c0_37 = arith.constant 0 : index
    %42 = vector.load %arg11[%c1, %c0_36, %c0_37] : memref<3x32x32xbf16, #tpu.memory_space<vmem>>, vector<1x32x32xbf16>
    %43 = vector.shape_cast %42 : vector<1x32x32xbf16> to vector<32x32xbf16>
    %cst_38 = arith.constant dense<0.000000e+00> : vector<16x32xf32>
    %44 = tpu.matmul %32, %43, %cst_38 {dimension_numbers = #tpu.dot_dimension_numbers<[1], [0], [0], [1], [0, 0, 1, 1], [], []>} : vector<16x32xbf16>, vector<32x32xbf16>, vector<16x32xf32> -> vector<16x32xf32>
    %45 = arith.addf %41, %44 : vector<16x32xf32>
    %c2 = arith.constant 2 : index
    %c0_39 = arith.constant 0 : index
    %c0_40 = arith.constant 0 : index
    %46 = vector.load %arg11[%c2, %c0_39, %c0_40] : memref<3x32x32xbf16, #tpu.memory_space<vmem>>, vector<1x32x32xbf16>
    %47 = vector.shape_cast %46 : vector<1x32x32xbf16> to vector<32x32xbf16>
    %cst_41 = arith.constant dense<0.000000e+00> : vector<16x32xf32>
    %48 = tpu.matmul %38, %47, %cst_41 {dimension_numbers = #tpu.dot_dimension_numbers<[1], [0], [0], [1], [0, 0, 1, 1], [], []>} : vector<16x32xbf16>, vector<32x32xbf16>, vector<16x32xf32> -> vector<16x32xf32>
    %49 = arith.addf %45, %48 : vector<16x32xf32>
    %c0_42 = arith.constant 0 : index
    %c0_43 = arith.constant 0 : index
    %50 = vector.load %arg12[%c0_42, %c0_43] : memref<1x32xf32, #tpu.memory_space<vmem>>, vector<1x32xf32>
    %51 = vector.broadcast %50 : vector<1x32xf32> to vector<16x32xf32>
    %52 = arith.addf %49, %51 : vector<16x32xf32>
    %cst_44 = arith.constant 0.000000e+00 : f32
    %53 = vector.broadcast %cst_44 : f32 to vector<16x32xf32>
    %54 = arith.maximumf %52, %53 : vector<16x32xf32>
    %55 = arith.truncf %54 : vector<16x32xf32> to vector<16x32xbf16>
    %c0_45 = arith.constant 0 : index
    %c0_46 = arith.constant 0 : index
    %56 = vector.load %arg13[%c0_45, %c0_46] : memref<32x128xbf16, #tpu.memory_space<vmem>>, vector<32x128xbf16>
    %cst_47 = arith.constant dense<0.000000e+00> : vector<16x128xf32>
    %57 = tpu.matmul %55, %56, %cst_47 {dimension_numbers = #tpu.dot_dimension_numbers<[1], [0], [0], [1], [0, 0, 1, 1], [], []>} : vector<16x32xbf16>, vector<32x128xbf16>, vector<16x128xf32> -> vector<16x128xf32>
    %c0_48 = arith.constant 0 : index
    %c0_49 = arith.constant 0 : index
    %58 = vector.load %arg14[%c0_48, %c0_49] : memref<1x128xf32, #tpu.memory_space<vmem>>, vector<1x128xf32>
    %59 = vector.broadcast %58 : vector<1x128xf32> to vector<16x128xf32>
    %60 = arith.addf %57, %59 : vector<16x128xf32>
    %61 = arith.addf %60, %23 : vector<16x128xf32>
    %cst_50 = arith.constant 0.000000e+00 : f32
    %62 = vector.broadcast %cst_50 : f32 to vector<16x128xf32>
    %63 = arith.maximumf %61, %62 : vector<16x128xf32>
    %c0_51 = arith.constant 0 : index
    %c0_52 = arith.constant 0 : index
    %64 = vector.load %arg17[%c0_51, %c0_52] : memref<2x16xf32, #tpu.memory_space<vmem>>, vector<2x16xf32>
    %cst_53 = arith.constant dense<0.000000e+00> : vector<2x128xf32>
    %65 = tpu.matmul %64, %63, %cst_53 {dimension_numbers = #tpu.dot_dimension_numbers<[1], [0], [0], [1], [0, 0, 1, 1], [], []>} : vector<2x16xf32>, vector<16x128xf32>, vector<2x128xf32> -> vector<2x128xf32>
    %66 = arith.truncf %65 : vector<2x128xf32> to vector<2x128xbf16>
    %c0_54 = arith.constant 0 : index
    %c0_55 = arith.constant 0 : index
    %67 = vector.load %arg18[%c0_54, %c0_55] : memref<128x128xbf16, #tpu.memory_space<vmem>>, vector<128x128xbf16>
    %cst_56 = arith.constant dense<0.000000e+00> : vector<2x128xf32>
    %68 = tpu.matmul %66, %67, %cst_56 {dimension_numbers = #tpu.dot_dimension_numbers<[1], [0], [0], [1], [0, 0, 1, 1], [], []>} : vector<2x128xbf16>, vector<128x128xbf16>, vector<2x128xf32> -> vector<2x128xf32>
    %c0_57 = arith.constant 0 : index
    %c0_58 = arith.constant 0 : index
    %69 = vector.load %arg19[%c0_57, %c0_58] : memref<1x128xf32, #tpu.memory_space<vmem>>, vector<1x128xf32>
    %70 = vector.broadcast %69 : vector<1x128xf32> to vector<2x128xf32>
    %71 = arith.addf %68, %70 : vector<2x128xf32>
    %c0_59 = arith.constant 0 : index
    %c0_60 = arith.constant 0 : index
    %72 = vector.load %arg20[%c0_59, %c0_60] : memref<2x128xf32, #tpu.memory_space<vmem>>, vector<2x128xf32>
    tpu.vector_store %arg20[%c0_59, %c0_60], %71 {strides = array<i32>} : memref<2x128xf32, #tpu.memory_space<vmem>>, vector<2x128xf32>,
    return
  }
}

</mosaic_0001>

<llo_original>
// kernel: cnn_head2_forward.1
$region0: #{cnn_head2_forward.1}
  #allocation0 [shape = 'u32[]', space=smem, size = 0x4, offset = 0x4, fixed_abs, tag = 'smem constant byte address 0x4 - core index']
  #allocation1 [shape = 'u32[144,128]{1,0:T(1,128)}', space=vmem, size = 0x12000, scoped, tag = 'internal scratch']
  %s0 = inlined_call_operand.vmem [shape: f32[16,4], index: 0, kind: input, shape index: {}]
  %s1 = inlined_call_operand.vmem [shape: f32[16,4], index: 1, kind: input, shape index: {}]
  %s2 = inlined_call_operand.vmem [shape: bf16[4,128], index: 2, kind: input, shape index: {}]
  %s3 = inlined_call_operand.vmem [shape: f32[1,128], index: 3, kind: input, shape index: {}]
  %s4 = inlined_call_operand.vmem [shape: bf16[4,128], index: 4, kind: input, shape index: {}]
  %s5 = inlined_call_operand.vmem [shape: f32[1,128], index: 5, kind: input, shape index: {}]
  %s6 = inlined_call_operand.vmem [shape: bf16[128,128], index: 6, kind: input, shape index: {}]
  %s7 = inlined_call_operand.vmem [shape: bf16[128,128], index: 7, kind: input, shape index: {}]
  %s8 = inlined_call_operand.vmem [shape: f32[1,128], index: 8, kind: input, shape index: {}]
  %s9 = inlined_call_operand.vmem [shape: bf16[128,32], index: 9, kind: input, shape index: {}]
  %s10 = inlined_call_operand.vmem [shape: f32[1,32], index: 10, kind: input, shape index: {}]
  %s11 = inlined_call_operand.vmem [shape: bf16[3,32,32], index: 11, kind: input, shape index: {}]
  %s12 = inlined_call_operand.vmem [shape: f32[1,32], index: 12, kind: input, shape index: {}]
  %s13 = inlined_call_operand.vmem [shape: bf16[32,128], index: 13, kind: input, shape index: {}]
  %s14 = inlined_call_operand.vmem [shape: f32[1,128], index: 14, kind: input, shape index: {}]
  %s15 = inlined_call_operand.vmem [shape: bf16[16,16], index: 15, kind: input, shape index: {}]
  %s16 = inlined_call_operand.vmem [shape: bf16[16,16], index: 16, kind: input, shape index: {}]
  %s17 = inlined_call_operand.vmem [shape: f32[2,16], index: 17, kind: input, shape index: {}]
  %s18 = inlined_call_operand.vmem [shape: bf16[128,128], index: 18, kind: input, shape index: {}]
  %s19 = inlined_call_operand.vmem [shape: f32[1,128], index: 19, kind: input, shape index: {}]
  %s20 = inlined_call_operand.hbm [shape: f32[2,128], index: 20, kind: output, shape index: {}]
  %s21 = sld [smem:[#allocation0]]
  $region90: #{cnn_head2_forward.1} parent=0
    _
  %s23 = ssub.s32 1, %s21
  %s24 = scalar_select 0, %s23, %s21
  $region1: #{cnn_head2_forward.1} parent=0
    #allocation2 [shape = 'u8[1024]{0}', space=vmem, size = 0x400, scoped, tag = 'output window, operand 0, single buffered']
    #allocation3 [shape = 's32[1]{0}', space=sflag, size = 0x4, scoped, tag = 'scoped memory for cnn_head2_forward.1']
    %25 = vsyncpa [#allocation3], 0
    // Predicated region
    $region2: #{cnn_head2_forward.1} parent=1 // pred_check
      _
    $region3: #{cnn_head2_forward.1} parent=1 // pred_check_branch
      %27 = sbr.rel (0) target = $region5
    $region4: #{cnn_head2_forward.1} parent=1 // pred_region
      _
    $region5: #{cnn_head2_forward.1} parent=1 // pred_fallthru
      _
    // Predicated region
    $region6: #{cnn_head2_forward.1} parent=1 // pred_check
      _
    $region7: #{cnn_head2_forward.1} parent=1 // pred_check_branch
      %29 = sbr.rel (0) target = $region9
    $region8: #{cnn_head2_forward.1} parent=1 // pred_region
      _
    $region9: #{cnn_head2_forward.1} parent=1 // pred_fallthru
      _
    // Predicated region
    $region10: #{cnn_head2_forward.1} parent=1 // pred_check
      _
    $region11: #{cnn_head2_forward.1} parent=1 // pred_check_branch
      %31 = sbr.rel (0) target = $region13
    $region12: #{cnn_head2_forward.1} parent=1 // pred_region
      _
    $region13: #{cnn_head2_forward.1} parent=1 // pred_fallthru
      _
    // Predicated region
    $region14: #{cnn_head2_forward.1} parent=1 // pred_check
      _
    $region15: #{cnn_head2_forward.1} parent=1 // pred_check_branch
      %33 = sbr.rel (0) target = $region17
    $region16: #{cnn_head2_forward.1} parent=1 // pred_region
      _
    $region17: #{cnn_head2_forward.1} parent=1 // pred_fallthru
      _
    // Predicated region
    $region18: #{cnn_head2_forward.1} parent=1 // pred_check
      _
    $region19: #{cnn_head2_forward.1} parent=1 // pred_check_branch
      %35 = sbr.rel (0) target = $region21
    $region20: #{cnn_head2_forward.1} parent=1 // pred_region
      _
    $region21: #{cnn_head2_forward.1} parent=1 // pred_fallthru
      _
    // Predicated region
    $region22: #{cnn_head2_forward.1} parent=1 // pred_check
      _
    $region23: #{cnn_head2_forward.1} parent=1 // pred_check_branch
      %37 = sbr.rel (0) target = $region25
    $region24: #{cnn_head2_forward.1} parent=1 // pred_region
      _
    $region25: #{cnn_head2_forward.1} parent=1 // pred_fallthru
      _
    // Predicated region
    $region26: #{cnn_head2_forward.1} parent=1 // pred_check
      _
    $region27: #{cnn_head2_forward.1} parent=1 // pred_check_branch
      %39 = sbr.rel (0) target = $region29
    $region28: #{cnn_head2_forward.1} parent=1 // pred_region
      _
    $region29: #{cnn_head2_forward.1} parent=1 // pred_fallthru
      _
    // Predicated region
    $region30: #{cnn_head2_forward.1} parent=1 // pred_check
      _
    $region31: #{cnn_head2_forward.1} parent=1 // pred_check_branch
      %41 = sbr.rel (0) target = $region33
    $region32: #{cnn_head2_forward.1} parent=1 // pred_region
      _
    $region33: #{cnn_head2_forward.1} parent=1 // pred_fallthru
      _
    // Predicated region
    $region34: #{cnn_head2_forward.1} parent=1 // pred_check
      _
    $region35: #{cnn_head2_forward.1} parent=1 // pred_check_branch
      %43 = sbr.rel (0) target = $region37
    $region36: #{cnn_head2_forward.1} parent=1 // pred_region
      _
    $region37: #{cnn_head2_forward.1} parent=1 // pred_fallthru
      _
    // Predicated region
    $region38: #{cnn_head2_forward.1} parent=1 // pred_check
      _
    $region39: #{cnn_head2_forward.1} parent=1 // pred_check_branch
      %45 = sbr.rel (0) target = $region41
    $region40: #{cnn_head2_forward.1} parent=1 // pred_region
      _
    $region41: #{cnn_head2_forward.1} parent=1 // pred_fallthru
      _
    // Predicated region
    $region42: #{cnn_head2_forward.1} parent=1 // pred_check
      _
    $region43: #{cnn_head2_forward.1} parent=1 // pred_check_branch
      %47 = sbr.rel (0) target = $region45
    $region44: #{cnn_head2_forward.1} parent=1 // pred_region
      _
    $region45: #{cnn_head2_forward.1} parent=1 // pred_fallthru
      _
    // Predicated region
    $region46: #{cnn_head2_forward.1} parent=1 // pred_check
      _
    $region47: #{cnn_head2_forward.1} parent=1 // pred_check_branch
      %49 = sbr.rel (0) target = $region49
    $region48: #{cnn_head2_forward.1} parent=1 // pred_region
      _
    $region49: #{cnn_head2_forward.1} parent=1 // pred_fallthru
      _
    // Predicated region
    $region50: #{cnn_head2_forward.1} parent=1 // pred_check
      _
    $region51: #{cnn_head2_forward.1} parent=1 // pred_check_branch
      %51 = sbr.rel (0) target = $region53
    $region52: #{cnn_head2_forward.1} parent=1 // pred_region
      _
    $region53: #{cnn_head2_forward.1} parent=1 // pred_fallthru
      _
    // Predicated region
    $region54: #{cnn_head2_forward.1} parent=1 // pred_check
      _
    $region55: #{cnn_head2_forward.1} parent=1 // pred_check_branch
      %53 = sbr.rel (0) target = $region57
    $region56: #{cnn_head2_forward.1} parent=1 // pred_region
      _
    $region57: #{cnn_head2_forward.1} parent=1 // pred_fallthru
      _
    // Predicated region
    $region58: #{cnn_head2_forward.1} parent=1 // pred_check
      _
    $region59: #{cnn_head2_forward.1} parent=1 // pred_check_branch
      %55 = sbr.rel (0) target = $region61
    $region60: #{cnn_head2_forward.1} parent=1 // pred_region
      _
    $region61: #{cnn_head2_forward.1} parent=1 // pred_fallthru
      _
    // Predicated region
    $region62: #{cnn_head2_forward.1} parent=1 // pred_check
      _
    $region63: #{cnn_head2_forward.1} parent=1 // pred_check_branch
      %57 = sbr.rel (0) target = $region65
    $region64: #{cnn_head2_forward.1} parent=1 // pred_region
      _
    $region65: #{cnn_head2_forward.1} parent=1 // pred_fallthru
      _
    // Predicated region
    $region66: #{cnn_head2_forward.1} parent=1 // pred_check
      _
    $region67: #{cnn_head2_forward.1} parent=1 // pred_check_branch
      %59 = sbr.rel (0) target = $region69
    $region68: #{cnn_head2_forward.1} parent=1 // pred_region
      _
    $region69: #{cnn_head2_forward.1} parent=1 // pred_fallthru
      _
    // Predicated region
    $region70: #{cnn_head2_forward.1} parent=1 // pred_check
      _
    $region71: #{cnn_head2_forward.1} parent=1 // pred_check_branch
      %61 = sbr.rel (0) target = $region73
    $region72: #{cnn_head2_forward.1} parent=1 // pred_region
      _
    $region73: #{cnn_head2_forward.1} parent=1 // pred_fallthru
      _
    // Predicated region
    $region74: #{cnn_head2_forward.1} parent=1 // pred_check
      _
    $region75: #{cnn_head2_forward.1} parent=1 // pred_check_branch
      %63 = sbr.rel (0) target = $region77
    $region76: #{cnn_head2_forward.1} parent=1 // pred_region
      _
    $region77: #{cnn_head2_forward.1} parent=1 // pred_fallthru
      _
    // Predicated region
    $region78: #{cnn_head2_forward.1} parent=1 // pred_check
      _
    $region79: #{cnn_head2_forward.1} parent=1 // pred_check_branch
      %65 = sbr.rel (0) target = $region81
    $region80: #{cnn_head2_forward.1} parent=1 // pred_region
      _
    $region81: #{cnn_head2_forward.1} parent=1 // pred_fallthru
      _
    %v67 = vld [vmem:[%s0] sm:$0xff]
    %v68 = vld [vmem:[%s0 + $0x8] sm:$0xff]
    %v69 = vpack.c.bf16 %v68, %v67
    %v70 = vld [vmem:[%s2] sm:$0x3]
    %v71 = vld [vmem:[%s3] sm:$0x1]
    %v73 = vlaneseq
    %v74 = vshrl.u32 %v73, 7
    %v75 = vsub.s32 0, %v74
    %v76 = vrot.slane %v71, %v75
    %vm78 = vcmask 31744
    %v80 = vsel %vm78, %v69, 0
    %vm82 = vcmask 1041408
    %v84 = vsel %vm82, %v70, 0
    %86 = vmatprep.subr.bf16.mxu0 0
    %87 = vmatpush1.bf16.msra.mxu0 %v84
    %88 = vmatprep.subr.bf16.mxu0 0
    %89 = vmatpush1.bf16.msra.mxu0 0
    %90 = vmatprep.subr.bf16.mxu0 0
    %91 = vmatpush1.bf16.msra.mxu0 0
    %92 = vmatprep.subr.bf16.mxu0 0
    %93 = vmatpush1.bf16.msra.mxu0 0
    %94 = vmatprep.subr.bf16.mxu0 0
    %95 = vmatpush1.bf16.msra.mxu0 0
    %96 = vmatprep.subr.bf16.mxu0 0
    %97 = vmatpush1.bf16.msra.mxu0 0
    %98 = vmatprep.subr.bf16.mxu0 0
    %99 = vmatpush1.bf16.msra.mxu0 0
    %100 = vmatprep.subr.bf16.mxu0 0
    %101 = vmatpush1.bf16.msra.mxu0 0
    %102 = vmatprep.subr.bf16.mxu0 0
    %103 = vmatpush1.bf16.msra.mxu0 0
    %104 = vmatprep.subr.bf16.mxu0 0
    %105 = vmatpush1.bf16.msra.mxu0 0
    %106 = vmatprep.subr.bf16.mxu0 0
    %107 = vmatpush1.bf16.msra.mxu0 0
    %108 = vmatprep.subr.bf16.mxu0 0
    %109 = vmatpush1.bf16.msra.mxu0 0
    %110 = vmatprep.subr.bf16.mxu0 0
    %111 = vmatpush1.bf16.msra.mxu0 0
    %112 = vmatprep.subr.bf16.mxu0 0
    %113 = vmatpush1.bf16.msra.mxu0 0
    %114 = vmatprep.subr.bf16.mxu0 0
    %115 = vmatpush1.bf16.msra.mxu0 0
    %116 = vmatprep.subr.bf16.mxu0 0
    %117 = vmatpush1.bf16.msra.mxu0 0
    %118 = vmatprep.mubr.bf16.mxu0 0
    %119 = vmatmul.mubr.bf16.gmra.mrb[0].mxu0 %v80
    %v120 = vpop.f32.mrb[0].mxu0
    %v121 = vadd.f32 %v76, %v120
    %v122 = vpop.f32.mrb[0].mxu0
    %v123 = vpop.f32.mrb[0].mxu0
    %v124 = vadd.f32 %v76, %v123
    %v125 = vpop.f32.mrb[0].mxu0
    %126 = vdwg.mxu0
    %v127 = vld [vmem:[%s1] sm:$0xff]
    %v128 = vld [vmem:[%s1 + $0x8] sm:$0xff]
    %v129 = vpack.c.bf16 %v128, %v127
    %v130 = vld [vmem:[%s4] sm:$0x3]
    %v131 = vld [vmem:[%s5] sm:$0x1]
    %v133 = vlaneseq
    %v134 = vshrl.u32 %v133, 7
    %v135 = vsub.s32 0, %v134
    %v136 = vrot.slane %v131, %v135
    %v139 = vsel %vm78, %v129, 0
    %v142 = vsel %vm82, %v130, 0
    %144 = vmatprep.subr.bf16.mxu0 0
    %145 = vmatpush1.bf16.msra.mxu0 %v142
    %146 = vmatprep.subr.bf16.mxu0 0
    %147 = vmatpush1.bf16.msra.mxu0 0
    %148 = vmatprep.subr.bf16.mxu0 0
    %149 = vmatpush1.bf16.msra.mxu0 0
    %150 = vmatprep.subr.bf16.mxu0 0
    %151 = vmatpush1.bf16.msra.mxu0 0
    %152 = vmatprep.subr.bf16.mxu0 0
    %153 = vmatpush1.bf16.msra.mxu0 0
    %154 = vmatprep.subr.bf16.mxu0 0
    %155 = vmatpush1.bf16.msra.mxu0 0
    %156 = vmatprep.subr.bf16.mxu0 0
    %157 = vmatpush1.bf16.msra.mxu0 0
    %158 = vmatprep.subr.bf16.mxu0 0
    %159 = vmatpush1.bf16.msra.mxu0 0
    %160 = vmatprep.subr.bf16.mxu0 0
    %161 = vmatpush1.bf16.msra.mxu0 0
    %162 = vmatprep.subr.bf16.mxu0 0
    %163 = vmatpush1.bf16.msra.mxu0 0
    %164 = vmatprep.subr.bf16.mxu0 0
    %165 = vmatpush1.bf16.msra.mxu0 0
    %166 = vmatprep.subr.bf16.mxu0 0
    %167 = vmatpush1.bf16.msra.mxu0 0
    %168 = vmatprep.subr.bf16.mxu0 0
    %169 = vmatpush1.bf16.msra.mxu0 0
    %170 = vmatprep.subr.bf16.mxu0 0
    %171 = vmatpush1.bf16.msra.mxu0 0
    %172 = vmatprep.subr.bf16.mxu0 0
    %173 = vmatpush1.bf16.msra.mxu0 0
    %174 = vmatprep.subr.bf16.mxu0 0
    %175 = vmatpush1.bf16.msra.mxu0 0
    %176 = vmatprep.mubr.bf16.mxu0 0
    %177 = vmatmul.mubr.bf16.gmra.mrb[0].mxu0 %v139
    %v178 = vpop.f32.mrb[0].mxu0
    %v179 = vadd.f32 %v136, %v178
    %v180 = vpop.f32.mrb[0].mxu0
    %v181 = vpop.f32.mrb[0].mxu0
    %v182 = vadd.f32 %v136, %v181
    %v183 = vpop.f32.mrb[0].mxu0
    %184 = vdwg.mxu0
    %v185 = vpack.c.bf16 %v124, %v121
    %v186 = vld [vmem:[%s6] sm:$0xf]
    %v187 = vld [vmem:[%s6 + $0x4] sm:$0xf]
    %v188 = vld [vmem:[%s6 + $0x8] sm:$0xf]
    %v189 = vld [vmem:[%s6 + $0xc] sm:$0xf]
    %v190 = vld [vmem:[%s6 + $0x10] sm:$0xf]
    %v191 = vld [vmem:[%s6 + $0x14] sm:$0xf]
    %v192 = vld [vmem:[%s6 + $0x18] sm:$0xf]
    %v193 = vld [vmem:[%s6 + $0x1c] sm:$0xf]
    %v194 = vld [vmem:[%s6 + $0x20] sm:$0xf]
    %v195 = vld [vmem:[%s6 + $0x24] sm:$0xf]
    %v196 = vld [vmem:[%s6 + $0x28] sm:$0xf]
    %v197 = vld [vmem:[%s6 + $0x2c] sm:$0xf]
    %v198 = vld [vmem:[%s6 + $0x30] sm:$0xf]
    %v199 = vld [vmem:[%s6 + $0x34] sm:$0xf]
    %v200 = vld [vmem:[%s6 + $0x38] sm:$0xf]
    %v201 = vld [vmem:[%s6 + $0x3c] sm:$0xf]
    %v202 = vpack.c.bf16 %v182, %v179
    %v203 = vld [vmem:[%s7] sm:$0xf]
    %v204 = vld [vmem:[%s7 + $0x4] sm:$0xf]
    %v205 = vld [vmem:[%s7 + $0x8] sm:$0xf]
    %v206 = vld [vmem:[%s7 + $0xc] sm:$0xf]
    %v207 = vld [vmem:[%s7 + $0x10] sm:$0xf]
    %v208 = vld [vmem:[%s7 + $0x14] sm:$0xf]
    %v209 = vld [vmem:[%s7 + $0x18] sm:$0xf]
    %v210 = vld [vmem:[%s7 + $0x1c] sm:$0xf]
    %v211 = vld [vmem:[%s7 + $0x20] sm:$0xf]
    %v212 = vld [vmem:[%s7 + $0x24] sm:$0xf]
    %v213 = vld [vmem:[%s7 + $0x28] sm:$0xf]
    %v214 = vld [vmem:[%s7 + $0x2c] sm:$0xf]
    %v215 = vld [vmem:[%s7 + $0x30] sm:$0xf]
    %v216 = vld [vmem:[%s7 + $0x34] sm:$0xf]
    %v217 = vld [vmem:[%s7 + $0x38] sm:$0xf]
    %v218 = vld [vmem:[%s7 + $0x3c] sm:$0xf]
    %v235 = vunpack.c.l.b16 %v203
    %v236 = vunpack.c.l.b16 %v204
    %v237 = vunpack.c.l.b16 %v205
    %v238 = vunpack.c.l.b16 %v206
    %v239 = vunpack.c.l.b16 %v207
    %v240 = vunpack.c.l.b16 %v208
    %v241 = vunpack.c.l.b16 %v209
    %v242 = vunpack.c.l.b16 %v210
    %v243 = vunpack.c.l.b16 %v211
    %v244 = vunpack.c.l.b16 %v212
    %v245 = vunpack.c.l.b16 %v213
    %v246 = vunpack.c.l.b16 %v214
    %v247 = vunpack.c.l.b16 %v215
    %v248 = vunpack.c.l.b16 %v216
    %v249 = vunpack.c.l.b16 %v217
    %v250 = vunpack.c.l.b16 %v218
    %v251 = vpack.c.b16 %v236, %v235
    %v252 = vpack.c.b16 %v238, %v237
    %v253 = vpack.c.b16 %v240, %v239
    %v254 = vpack.c.b16 %v242, %v241
    %v255 = vpack.c.b16 %v244, %v243
    %v256 = vpack.c.b16 %v246, %v245
    %v257 = vpack.c.b16 %v248, %v247
    %v258 = vpack.c.b16 %v250, %v249
    %267 = vmatprep.subr.bf16.mxu0 0
    %268 = vmatpush1.bf16.msra.mxu0 %v251
    %269 = vmatprep.subr.bf16.mxu0 0
    %270 = vmatpush1.bf16.msra.mxu0 %v252
    %271 = vmatprep.subr.bf16.mxu0 0
    %272 = vmatpush1.bf16.msra.mxu0 %v253
    %273 = vmatprep.subr.bf16.mxu0 0
    %274 = vmatpush1.bf16.msra.mxu0 %v254
    %275 = vmatprep.subr.bf16.mxu0 0
    %276 = vmatpush1.bf16.msra.mxu0 %v255
    %277 = vmatprep.subr.bf16.mxu0 0
    %278 = vmatpush1.bf16.msra.mxu0 %v256
    %279 = vmatprep.subr.bf16.mxu0 0
    %280 = vmatpush1.bf16.msra.mxu0 %v257
    %281 = vmatprep.subr.bf16.mxu0 0
    %282 = vmatpush1.bf16.msra.mxu0 %v258
    %283 = vmatprep.subr.bf16.mxu0 0
    %284 = vmatpush1.bf16.msra.mxu0 0
    %285 = vmatprep.subr.bf16.mxu0 0
    %286 = vmatpush1.bf16.msra.mxu0 0
    %287 = vmatprep.subr.bf16.mxu0 0
    %288 = vmatpush1.bf16.msra.mxu0 0
    %289 = vmatprep.subr.bf16.mxu0 0
    %290 = vmatpush1.bf16.msra.mxu0 0
    %291 = vmatprep.subr.bf16.mxu0 0
    %292 = vmatpush1.bf16.msra.mxu0 0
    %293 = vmatprep.subr.bf16.mxu0 0
    %294 = vmatpush1.bf16.msra.mxu0 0
    %295 = vmatprep.subr.bf16.mxu0 0
    %296 = vmatpush1.bf16.msra.mxu0 0
    %297 = vmatprep.subr.bf16.mxu0 0
    %298 = vmatpush1.bf16.msra.mxu0 0
    %299 = vmatprep.mubr.bf16.mxu0 0
    %300 = vmatmul.mubr.bf16.gmra.mrb[0].mxu0 %v202
    %v301 = vpop.f32.mrb[0].mxu0
    %v302 = vadd.f32 0.0, %v301
    %v303 = vpop.f32.mrb[0].mxu0
    %v304 = vpop.f32.mrb[0].mxu0
    %v305 = vadd.f32 0.0, %v304
    %v306 = vpop.f32.mrb[0].mxu0
    %307 = vdwg.mxu0
    %v324 = vunpack.c.l.b16 %v186
    %v325 = vunpack.c.l.b16 %v187
    %v326 = vunpack.c.l.b16 %v188
    %v327 = vunpack.c.l.b16 %v189
    %v328 = vunpack.c.l.b16 %v190
    %v329 = vunpack.c.l.b16 %v191
    %v330 = vunpack.c.l.b16 %v192
    %v331 = vunpack.c.l.b16 %v193
    %v332 = vunpack.c.l.b16 %v194
    %v333 = vunpack.c.l.b16 %v195
    %v334 = vunpack.c.l.b16 %v196
    %v335 = vunpack.c.l.b16 %v197
    %v336 = vunpack.c.l.b16 %v198
    %v337 = vunpack.c.l.b16 %v199
    %v338 = vunpack.c.l.b16 %v200
    %v339 = vunpack.c.l.b16 %v201
    %v340 = vpack.c.b16 %v325, %v324
    %v341 = vpack.c.b16 %v327, %v326
    %v342 = vpack.c.b16 %v329, %v328
    %v343 = vpack.c.b16 %v331, %v330
    %v344 = vpack.c.b16 %v333, %v332
    %v345 = vpack.c.b16 %v335, %v334
    %v346 = vpack.c.b16 %v337, %v336
    %v347 = vpack.c.b16 %v339, %v338
    %356 = vmatprep.subr.bf16.mxu0 0
    %357 = vmatpush1.bf16.msra.mxu0 %v340
    %358 = vmatprep.subr.bf16.mxu0 0
    %359 = vmatpush1.bf16.msra.mxu0 %v341
    %360 = vmatprep.subr.bf16.mxu0 0
    %361 = vmatpush1.bf16.msra.mxu0 %v342
    %362 = vmatprep.subr.bf16.mxu0 0
    %363 = vmatpush1.bf16.msra.mxu0 %v343
    %364 = vmatprep.subr.bf16.mxu0 0
    %365 = vmatpush1.bf16.msra.mxu0 %v344
    %366 = vmatprep.subr.bf16.mxu0 0
    %367 = vmatpush1.bf16.msra.mxu0 %v345
    %368 = vmatprep.subr.bf16.mxu0 0
    %369 = vmatpush1.bf16.msra.mxu0 %v346
    %370 = vmatprep.subr.bf16.mxu0 0
    %371 = vmatpush1.bf16.msra.mxu0 %v347
    %372 = vmatprep.subr.bf16.mxu0 0
    %373 = vmatpush1.bf16.msra.mxu0 0
    %374 = vmatprep.subr.bf16.mxu0 0
    %375 = vmatpush1.bf16.msra.mxu0 0
    %376 = vmatprep.subr.bf16.mxu0 0
    %377 = vmatpush1.bf16.msra.mxu0 0
    %378 = vmatprep.subr.bf16.mxu0 0
    %379 = vmatpush1.bf16.msra.mxu0 0
    %380 = vmatprep.subr.bf16.mxu0 0
    %381 = vmatpush1.bf16.msra.mxu0 0
    %382 = vmatprep.subr.bf16.mxu0 0
    %383 = vmatpush1.bf16.msra.mxu0 0
    %384 = vmatprep.subr.bf16.mxu0 0
    %385 = vmatpush1.bf16.msra.mxu0 0
    %386 = vmatprep.subr.bf16.mxu0 0
    %387 = vmatpush1.bf16.msra.mxu0 0
    %388 = vmatprep.mubr.bf16.mxu0 0
    %389 = vmatmul.mubr.bf16.gmra.mrb[0].mxu0 %v185
    %v390 = vpop.f32.mrb[0].mxu0
    %v391 = vadd.f32 %v302, %v390
    %v392 = vpop.f32.mrb[0].mxu0
    %v393 = vpop.f32.mrb[0].mxu0
    %v394 = vadd.f32 %v305, %v393
    %v395 = vpop.f32.mrb[0].mxu0
    %396 = vdwg.mxu0
    %v397 = vld [vmem:[%s8] sm:$0x1]
    %v399 = vlaneseq
    %v400 = vshrl.u32 %v399, 7
    %v401 = vsub.s32 0, %v400
    %v402 = vrot.slane %v397, %v401
    %v404 = vadd.f32 %v391, %v402
    %v405 = vadd.f32 %v394, %v402
    %v406 = vpack.c.bf16 %v405, %v404
    %v407 = vld [vmem:[%s9] sm:$0xf]
    %v408 = vld [vmem:[%s9 + $0x4] sm:$0xf]
    %v409 = vld [vmem:[%s9 + $0x8] sm:$0xf]
    %v410 = vld [vmem:[%s9 + $0xc] sm:$0xf]
    %v411 = vld [vmem:[%s9 + $0x10] sm:$0xf]
    %v412 = vld [vmem:[%s9 + $0x14] sm:$0xf]
    %v413 = vld [vmem:[%s9 + $0x18] sm:$0xf]
    %v414 = vld [vmem:[%s9 + $0x1c] sm:$0xf]
    %v415 = vld [vmem:[%s9 + $0x20] sm:$0xf]
    %v416 = vld [vmem:[%s9 + $0x24] sm:$0xf]
    %v417 = vld [vmem:[%s9 + $0x28] sm:$0xf]
    %v418 = vld [vmem:[%s9 + $0x2c] sm:$0xf]
    %v419 = vld [vmem:[%s9 + $0x30] sm:$0xf]
    %v420 = vld [vmem:[%s9 + $0x34] sm:$0xf]
    %v421 = vld [vmem:[%s9 + $0x38] sm:$0xf]
    %v422 = vld [vmem:[%s9 + $0x3c] sm:$0xf]
    %v423 = vld [vmem:[%s10] sm:$0x1]
    %v425 = vlaneseq
    %v426 = vshrl.u32 %v425, 7
    %v427 = vsub.s32 0, %v426
    %v428 = vrot.slane %v423, %v427
    %v446 = vunpack.c.l.b16 %v407
    %v447 = vunpack.c.l.b16 %v408
    %v448 = vunpack.c.l.b16 %v409
    %v449 = vunpack.c.l.b16 %v410
    %v450 = vunpack.c.l.b16 %v411
    %v451 = vunpack.c.l.b16 %v412
    %v452 = vunpack.c.l.b16 %v413
    %v453 = vunpack.c.l.b16 %v414
    %v454 = vunpack.c.l.b16 %v415
    %v455 = vunpack.c.l.b16 %v416
    %v456 = vunpack.c.l.b16 %v417
    %v457 = vunpack.c.l.b16 %v418
    %v458 = vunpack.c.l.b16 %v419
    %v459 = vunpack.c.l.b16 %v420
    %v460 = vunpack.c.l.b16 %v421
    %v461 = vunpack.c.l.b16 %v422
    %v462 = vpack.c.b16 %v447, %v446
    %v463 = vpack.c.b16 %v449, %v448
    %v464 = vpack.c.b16 %v451, %v450
    %v465 = vpack.c.b16 %v453, %v452
    %v466 = vpack.c.b16 %v455, %v454
    %v467 = vpack.c.b16 %v457, %v456
    %v468 = vpack.c.b16 %v459, %v458
    %v469 = vpack.c.b16 %v461, %v460
    %478 = vmatprep.subr.bf16.mxu0 0
    %479 = vmatpush1.bf16.msra.mxu0 %v462
    %480 = vmatprep.subr.bf16.mxu0 0
    %481 = vmatpush1.bf16.msra.mxu0 %v463
    %482 = vmatprep.subr.bf16.mxu0 0
    %483 = vmatpush1.bf16.msra.mxu0 %v464
    %484 = vmatprep.subr.bf16.mxu0 0
    %485 = vmatpush1.bf16.msra.mxu0 %v465
    %486 = vmatprep.subr.bf16.mxu0 0
    %487 = vmatpush1.bf16.msra.mxu0 %v466
    %488 = vmatprep.subr.bf16.mxu0 0
    %489 = vmatpush1.bf16.msra.mxu0 %v467
    %490 = vmatprep.subr.bf16.mxu0 0
    %491 = vmatpush1.bf16.msra.mxu0 %v468
    %492 = vmatprep.subr.bf16.mxu0 0
    %493 = vmatpush1.bf16.msra.mxu0 %v469
    %494 = vmatprep.subr.bf16.mxu0 0
    %495 = vmatpush1.bf16.msra.mxu0 0
    %496 = vmatprep.subr.bf16.mxu0 0
    %497 = vmatpush1.bf16.msra.mxu0 0
    %498 = vmatprep.subr.bf16.mxu0 0
    %499 = vmatpush1.bf16.msra.mxu0 0
    %500 = vmatprep.subr.bf16.mxu0 0
    %501 = vmatpush1.bf16.msra.mxu0 0
    %502 = vmatprep.subr.bf16.mxu0 0
    %503 = vmatpush1.bf16.msra.mxu0 0
    %504 = vmatprep.subr.bf16.mxu0 0
    %505 = vmatpush1.bf16.msra.mxu0 0
    %506 = vmatprep.subr.bf16.mxu0 0
    %507 = vmatpush1.bf16.msra.mxu0 0
    %508 = vmatprep.subr.bf16.mxu0 0
    %509 = vmatpush1.bf16.msra.mxu0 0
    %510 = vmatprep.mubr.bf16.mxu0 0
    %511 = vmatmul.mubr.bf16.gmra.mrb[0].mxu0 %v406
    %v512 = vpop.f32.mrb[0].mxu0
    %v513 = vadd.f32 %v428, %v512
    %v514 = vpop.f32.mrb[0].mxu0
    %v515 = vpop.f32.mrb[0].mxu0
    %v516 = vadd.f32 %v428, %v515
    %v517 = vpop.f32.mrb[0].mxu0
    %518 = vdwg.mxu0
    %v519 = vmax.f32 %v513, 0.0
    %v520 = vmax.f32 %v516, 0.0
    %v521 = vpack.c.bf16 %v520, %v519
    %v522 = vld [vmem:[%s15] sm:$0xf]
    %v523 = vld [vmem:[%s15 + $0x4] sm:$0xf]
    %v526 = vunpack.c.l.b16 %v522
    %v527 = vunpack.c.l.b16 %v523
    %v528 = vpack.c.b16 %v527, %v526
    %vm529 = vcmask 130048
    %v531 = vsel %vm529, %v528, 0
    %533 = vmatprep.subr.bf16.mxu0 0
    %534 = vmatpush1.bf16.msra.mxu0 %v521
    %535 = vmatprep.subr.bf16.mxu0 0
    %536 = vmatpush1.bf16.msra.mxu0 0
    %537 = vmatprep.subr.bf16.mxu0 0
    %538 = vmatpush1.bf16.msra.mxu0 0
    %539 = vmatprep.subr.bf16.mxu0 0
    %540 = vmatpush1.bf16.msra.mxu0 0
    %541 = vmatprep.subr.bf16.mxu0 0
    %542 = vmatpush1.bf16.msra.mxu0 0
    %543 = vmatprep.subr.bf16.mxu0 0
    %544 = vmatpush1.bf16.msra.mxu0 0
    %545 = vmatprep.subr.bf16.mxu0 0
    %546 = vmatpush1.bf16.msra.mxu0 0
    %547 = vmatprep.subr.bf16.mxu0 0
    %548 = vmatpush1.bf16.msra.mxu0 0
    %549 = vmatprep.subr.bf16.mxu0 0
    %550 = vmatpush1.bf16.msra.mxu0 0
    %551 = vmatprep.subr.bf16.mxu0 0
    %552 = vmatpush1.bf16.msra.mxu0 0
    %553 = vmatprep.subr.bf16.mxu0 0
    %554 = vmatpush1.bf16.msra.mxu0 0
    %555 = vmatprep.subr.bf16.mxu0 0
    %556 = vmatpush1.bf16.msra.mxu0 0
    %557 = vmatprep.subr.bf16.mxu0 0
    %558 = vmatpush1.bf16.msra.mxu0 0
    %559 = vmatprep.subr.bf16.mxu0 0
    %560 = vmatpush1.bf16.msra.mxu0 0
    %561 = vmatprep.subr.bf16.mxu0 0
    %562 = vmatpush1.bf16.msra.mxu0 0
    %563 = vmatprep.subr.bf16.mxu0 0
    %564 = vmatpush1.bf16.msra.mxu0 0
    %565 = vmatprep.mubr.bf16.mxu0 0
    %566 = vmatmul.mubr.bf16.gmra.mrb[0].mxu0 %v531
    %v567 = vpop.f32.mrb[0].mxu0
    %v568 = vadd.f32 0.0, %v567
    %v569 = vpop.f32.mrb[0].mxu0
    %v570 = vpop.f32.mrb[0].mxu0
    %v571 = vadd.f32 0.0, %v570
    %v572 = vpop.f32.mrb[0].mxu0
    %573 = vdwg.mxu0
    %v574 = vpack.c.bf16 %v571, %v568
    %v575 = vld [vmem:[%s16] sm:$0xf]
    %v576 = vld [vmem:[%s16 + $0x4] sm:$0xf]
    %v579 = vunpack.c.l.b16 %v575
    %v580 = vunpack.c.l.b16 %v576
    %v581 = vpack.c.b16 %v580, %v579
    %v583 = vsel %vm529, %v581, 0
    %585 = vmatprep.subr.bf16.mxu0 0
    %586 = vmatpush1.bf16.msra.mxu0 %v521
    %587 = vmatprep.subr.bf16.mxu0 0
    %588 = vmatpush1.bf16.msra.mxu0 0
    %589 = vmatprep.subr.bf16.mxu0 0
    %590 = vmatpush1.bf16.msra.mxu0 0
    %591 = vmatprep.subr.bf16.mxu0 0
    %592 = vmatpush1.bf16.msra.mxu0 0
    %593 = vmatprep.subr.bf16.mxu0 0
    %594 = vmatpush1.bf16.msra.mxu0 0
    %595 = vmatprep.subr.bf16.mxu0 0
    %596 = vmatpush1.bf16.msra.mxu0 0
    %597 = vmatprep.subr.bf16.mxu0 0
    %598 = vmatpush1.bf16.msra.mxu0 0
    %599 = vmatprep.subr.bf16.mxu0 0
    %600 = vmatpush1.bf16.msra.mxu0 0
    %601 = vmatprep.subr.bf16.mxu0 0
    %602 = vmatpush1.bf16.msra.mxu0 0
    %603 = vmatprep.subr.bf16.mxu0 0
    %604 = vmatpush1.bf16.msra.mxu0 0
    %605 = vmatprep.subr.bf16.mxu0 0
    %606 = vmatpush1.bf16.msra.mxu0 0
    %607 = vmatprep.subr.bf16.mxu0 0
    %608 = vmatpush1.bf16.msra.mxu0 0
    %609 = vmatprep.subr.bf16.mxu0 0
    %610 = vmatpush1.bf16.msra.mxu0 0
    %611 = vmatprep.subr.bf16.mxu0 0
    %612 = vmatpush1.bf16.msra.mxu0 0
    %613 = vmatprep.subr.bf16.mxu0 0
    %614 = vmatpush1.bf16.msra.mxu0 0
    %615 = vmatprep.subr.bf16.mxu0 0
    %616 = vmatpush1.bf16.msra.mxu0 0
    %617 = vmatprep.mubr.bf16.mxu0 0
    %618 = vmatmul.mubr.bf16.gmra.mrb[0].mxu0 %v583
    %v619 = vpop.f32.mrb[0].mxu0
    %v620 = vadd.f32 0.0, %v619
    %v621 = vpop.f32.mrb[0].mxu0
    %v622 = vpop.f32.mrb[0].mxu0
    %v623 = vadd.f32 0.0, %v622
    %v624 = vpop.f32.mrb[0].mxu0
    %625 = vdwg.mxu0
    %v626 = vpack.c.bf16 %v623, %v620
    %v627 = vld [vmem:[%s11] sm:$0xf]
    %v628 = vld [vmem:[%s11 + $0x4] sm:$0xf]
    %v629 = vld [vmem:[%s11 + $0x8] sm:$0xf]
    %v630 = vld [vmem:[%s11 + $0xc] sm:$0xf]
    %s631 = scalar_lea.vmem %s11, 16
    %v632 = vld [vmem:[%s631] sm:$0xf]
    %v633 = vld [vmem:[%s631 + $0x4] sm:$0xf]
    %v634 = vld [vmem:[%s631 + $0x8] sm:$0xf]
    %v635 = vld [vmem:[%s631 + $0xc] sm:$0xf]
    %v640 = vunpack.c.l.b16 %v632
    %v641 = vunpack.c.l.b16 %v633
    %v642 = vunpack.c.l.b16 %v634
    %v643 = vunpack.c.l.b16 %v635
    %v644 = vpack.c.b16 %v641, %v640
    %v645 = vpack.c.b16 %v643, %v642
    %vm648 = vcmask 261120
    %v650 = vsel %vm648, %v521, 0
    %652 = vmatprep.subr.bf16.mxu0 0
    %653 = vmatpush1.bf16.msra.mxu0 %v644
    %654 = vmatprep.subr.bf16.mxu0 0
    %655 = vmatpush1.bf16.msra.mxu0 %v645
    %656 = vmatprep.subr.bf16.mxu0 0
    %657 = vmatpush1.bf16.msra.mxu0 0
    %658 = vmatprep.subr.bf16.mxu0 0
    %659 = vmatpush1.bf16.msra.mxu0 0
    %660 = vmatprep.subr.bf16.mxu0 0
    %661 = vmatpush1.bf16.msra.mxu0 0
    %662 = vmatprep.subr.bf16.mxu0 0
    %663 = vmatpush1.bf16.msra.mxu0 0
    %664 = vmatprep.subr.bf16.mxu0 0
    %665 = vmatpush1.bf16.msra.mxu0 0
    %666 = vmatprep.subr.bf16.mxu0 0
    %667 = vmatpush1.bf16.msra.mxu0 0
    %668 = vmatprep.subr.bf16.mxu0 0
    %669 = vmatpush1.bf16.msra.mxu0 0
    %670 = vmatprep.subr.bf16.mxu0 0
    %671 = vmatpush1.bf16.msra.mxu0 0
    %672 = vmatprep.subr.bf16.mxu0 0
    %673 = vmatpush1.bf16.msra.mxu0 0
    %674 = vmatprep.subr.bf16.mxu0 0
    %675 = vmatpush1.bf16.msra.mxu0 0
    %676 = vmatprep.subr.bf16.mxu0 0
    %677 = vmatpush1.bf16.msra.mxu0 0
    %678 = vmatprep.subr.bf16.mxu0 0
    %679 = vmatpush1.bf16.msra.mxu0 0
    %680 = vmatprep.subr.bf16.mxu0 0
    %681 = vmatpush1.bf16.msra.mxu0 0
    %682 = vmatprep.subr.bf16.mxu0 0
    %683 = vmatpush1.bf16.msra.mxu0 0
    %684 = vmatprep.mubr.bf16.mxu0 0
    %685 = vmatmul.mubr.bf16.gmra.mrb[0].mxu0 %v650
    %v686 = vpop.f32.mrb[0].mxu0
    %v687 = vadd.f32 0.0, %v686
    %v688 = vpop.f32.mrb[0].mxu0
    %v689 = vpop.f32.mrb[0].mxu0
    %v690 = vadd.f32 0.0, %v689
    %v691 = vpop.f32.mrb[0].mxu0
    %692 = vdwg.mxu0
    %v697 = vunpack.c.l.b16 %v627
    %v698 = vunpack.c.l.b16 %v628
    %v699 = vunpack.c.l.b16 %v629
    %v700 = vunpack.c.l.b16 %v630
    %v701 = vpack.c.b16 %v698, %v697
    %v702 = vpack.c.b16 %v700, %v699
    %v706 = vsel %vm648, %v574, 0
    %708 = vmatprep.subr.bf16.mxu0 0
    %709 = vmatpush1.bf16.msra.mxu0 %v701
    %710 = vmatprep.subr.bf16.mxu0 0
    %711 = vmatpush1.bf16.msra.mxu0 %v702
    %712 = vmatprep.subr.bf16.mxu0 0
    %713 = vmatpush1.bf16.msra.mxu0 0
    %714 = vmatprep.subr.bf16.mxu0 0
    %715 = vmatpush1.bf16.msra.mxu0 0
    %716 = vmatprep.subr.bf16.mxu0 0
    %717 = vmatpush1.bf16.msra.mxu0 0
    %718 = vmatprep.subr.bf16.mxu0 0
    %719 = vmatpush1.bf16.msra.mxu0 0
    %720 = vmatprep.subr.bf16.mxu0 0
    %721 = vmatpush1.bf16.msra.mxu0 0
    %722 = vmatprep.subr.bf16.mxu0 0
    %723 = vmatpush1.bf16.msra.mxu0 0
    %724 = vmatprep.subr.bf16.mxu0 0
    %725 = vmatpush1.bf16.msra.mxu0 0
    %726 = vmatprep.subr.bf16.mxu0 0
    %727 = vmatpush1.bf16.msra.mxu0 0
    %728 = vmatprep.subr.bf16.mxu0 0
    %729 = vmatpush1.bf16.msra.mxu0 0
    %730 = vmatprep.subr.bf16.mxu0 0
    %731 = vmatpush1.bf16.msra.mxu0 0
    %732 = vmatprep.subr.bf16.mxu0 0
    %733 = vmatpush1.bf16.msra.mxu0 0
    %734 = vmatprep.subr.bf16.mxu0 0
    %735 = vmatpush1.bf16.msra.mxu0 0
    %736 = vmatprep.subr.bf16.mxu0 0
    %737 = vmatpush1.bf16.msra.mxu0 0
    %738 = vmatprep.subr.bf16.mxu0 0
    %739 = vmatpush1.bf16.msra.mxu0 0
    %740 = vmatprep.mubr.bf16.mxu0 0
    %741 = vmatmul.mubr.bf16.gmra.mrb[0].mxu0 %v706
    %v742 = vpop.f32.mrb[0].mxu0
    %v743 = vadd.f32 %v687, %v742
    %v744 = vpop.f32.mrb[0].mxu0
    %v745 = vpop.f32.mrb[0].mxu0
    %v746 = vadd.f32 %v690, %v745
    %v747 = vpop.f32.mrb[0].mxu0
    %748 = vdwg.mxu0
    %s749 = scalar_lea.vmem %s11, 32
    %v750 = vld [vmem:[%s749] sm:$0xf]
    %v751 = vld [vmem:[%s749 + $0x4] sm:$0xf]
    %v752 = vld [vmem:[%s749 + $0x8] sm:$0xf]
    %v753 = vld [vmem:[%s749 + $0xc] sm:$0xf]
    %v758 = vunpack.c.l.b16 %v750
    %v759 = vunpack.c.l.b16 %v751
    %v760 = vunpack.c.l.b16 %v752
    %v761 = vunpack.c.l.b16 %v753
    %v762 = vpack.c.b16 %v759, %v758
    %v763 = vpack.c.b16 %v761, %v760
    %v767 = vsel %vm648, %v626, 0
    %769 = vmatprep.subr.bf16.mxu0 0
    %770 = vmatpush1.bf16.msra.mxu0 %v762
    %771 = vmatprep.subr.bf16.mxu0 0
    %772 = vmatpush1.bf16.msra.mxu0 %v763
    %773 = vmatprep.subr.bf16.mxu0 0
    %774 = vmatpush1.bf16.msra.mxu0 0
    %775 = vmatprep.subr.bf16.mxu0 0
    %776 = vmatpush1.bf16.msra.mxu0 0
    %777 = vmatprep.subr.bf16.mxu0 0
    %778 = vmatpush1.bf16.msra.mxu0 0
    %779 = vmatprep.subr.bf16.mxu0 0
    %780 = vmatpush1.bf16.msra.mxu0 0
    %781 = vmatprep.subr.bf16.mxu0 0
    %782 = vmatpush1.bf16.msra.mxu0 0
    %783 = vmatprep.subr.bf16.mxu0 0
    %784 = vmatpush1.bf16.msra.mxu0 0
    %785 = vmatprep.subr.bf16.mxu0 0
    %786 = vmatpush1.bf16.msra.mxu0 0
    %787 = vmatprep.subr.bf16.mxu0 0
    %788 = vmatpush1.bf16.msra.mxu0 0
    %789 = vmatprep.subr.bf16.mxu0 0
    %790 = vmatpush1.bf16.msra.mxu0 0
    %791 = vmatprep.subr.bf16.mxu0 0
    %792 = vmatpush1.bf16.msra.mxu0 0
    %793 = vmatprep.subr.bf16.mxu0 0
    %794 = vmatpush1.bf16.msra.mxu0 0
    %795 = vmatprep.subr.bf16.mxu0 0
    %796 = vmatpush1.bf16.msra.mxu0 0
    %797 = vmatprep.subr.bf16.mxu0 0
    %798 = vmatpush1.bf16.msra.mxu0 0
    %799 = vmatprep.subr.bf16.mxu0 0
    %800 = vmatpush1.bf16.msra.mxu0 0
    %801 = vmatprep.mubr.bf16.mxu0 0
    %802 = vmatmul.mubr.bf16.gmra.mrb[0].mxu0 %v767
    %v803 = vpop.f32.mrb[0].mxu0
    %v804 = vadd.f32 0.0, %v803
    %v805 = vpop.f32.mrb[0].mxu0
    %v806 = vpop.f32.mrb[0].mxu0
    %v807 = vadd.f32 0.0, %v806
    %v808 = vpop.f32.mrb[0].mxu0
    %809 = vdwg.mxu0
    %v810 = vadd.f32 %v743, %v804
    %v811 = vadd.f32 %v746, %v807
    %v812 = vld [vmem:[%s12] sm:$0x1]
    %v814 = vlaneseq
    %v815 = vshrl.u32 %v814, 7
    %v816 = vsub.s32 0, %v815
    %v817 = vrot.slane %v812, %v816
    %v819 = vadd.f32 %v810, %v817
    %v820 = vadd.f32 %v811, %v817
    %v821 = vmax.f32 %v819, 0.0
    %v822 = vmax.f32 %v820, 0.0
    %v823 = vpack.c.bf16 %v822, %v821
    %v824 = vld [vmem:[%s13] sm:$0xf]
    %v825 = vld [vmem:[%s13 + $0x4] sm:$0xf]
    %v826 = vld [vmem:[%s13 + $0x8] sm:$0xf]
    %v827 = vld [vmem:[%s13 + $0xc] sm:$0xf]
    %v828 = vld [vmem:[%s14] sm:$0x1]
    %v830 = vlaneseq
    %v831 = vshrl.u32 %v830, 7
    %v832 = vsub.s32 0, %v831
    %v833 = vrot.slane %v828, %v832
    %v839 = vunpack.c.l.b16 %v824
    %v840 = vunpack.c.l.b16 %v825
    %v841 = vunpack.c.l.b16 %v826
    %v842 = vunpack.c.l.b16 %v827
    %v843 = vpack.c.b16 %v840, %v839
    %v844 = vpack.c.b16 %v842, %v841
    %v848 = vsel %vm648, %v823, 0
    %850 = vmatprep.subr.bf16.mxu0 0
    %851 = vmatpush1.bf16.msra.mxu0 %v843
    %852 = vmatprep.subr.bf16.mxu0 0
    %853 = vmatpush1.bf16.msra.mxu0 %v844
    %854 = vmatprep.subr.bf16.mxu0 0
    %855 = vmatpush1.bf16.msra.mxu0 0
    %856 = vmatprep.subr.bf16.mxu0 0
    %857 = vmatpush1.bf16.msra.mxu0 0
    %858 = vmatprep.subr.bf16.mxu0 0
    %859 = vmatpush1.bf16.msra.mxu0 0
    %860 = vmatprep.subr.bf16.mxu0 0
    %861 = vmatpush1.bf16.msra.mxu0 0
    %862 = vmatprep.subr.bf16.mxu0 0
    %863 = vmatpush1.bf16.msra.mxu0 0
    %864 = vmatprep.subr.bf16.mxu0 0
    %865 = vmatpush1.bf16.msra.mxu0 0
    %866 = vmatprep.subr.bf16.mxu0 0
    %867 = vmatpush1.bf16.msra.mxu0 0
    %868 = vmatprep.subr.bf16.mxu0 0
    %869 = vmatpush1.bf16.msra.mxu0 0
    %870 = vmatprep.subr.bf16.mxu0 0
    %871 = vmatpush1.bf16.msra.mxu0 0
    %872 = vmatprep.subr.bf16.mxu0 0
    %873 = vmatpush1.bf16.msra.mxu0 0
    %874 = vmatprep.subr.bf16.mxu0 0
    %875 = vmatpush1.bf16.msra.mxu0 0
    %876 = vmatprep.subr.bf16.mxu0 0
    %877 = vmatpush1.bf16.msra.mxu0 0
    %878 = vmatprep.subr.bf16.mxu0 0
    %879 = vmatpush1.bf16.msra.mxu0 0
    %880 = vmatprep.subr.bf16.mxu0 0
    %881 = vmatpush1.bf16.msra.mxu0 0
    %882 = vmatprep.mubr.bf16.mxu0 0
    %883 = vmatmul.mubr.bf16.gmra.mrb[0].mxu0 %v848
    %v884 = vpop.f32.mrb[0].mxu0
    %v885 = vadd.f32 %v833, %v884
    %v886 = vpop.f32.mrb[0].mxu0
    %v887 = vpop.f32.mrb[0].mxu0
    %v888 = vadd.f32 %v833, %v887
    %v889 = vpop.f32.mrb[0].mxu0
    %890 = vdwg.mxu0
    %v891 = vadd.f32 %v885, %v404
    %v892 = vadd.f32 %v888, %v405
    %v893 = vmax.f32 %v891, 0.0
    %v894 = vmax.f32 %v892, 0.0
    %v895 = vld [vmem:[%s17] sm:$0x3]
    %v897 = vsel %vm529, %v895, 0
    %899 = vmatprep.subr.mxu0 0.0
    %900 = vmatpush1.msra.mxu0 %v893
    %901 = vmatprep.subr.mxu0 0.0
    %902 = vmatpush1.msra.mxu0 %v894
    %903 = vmatprep.subr.mxu0 0.0
    %904 = vmatpush1.msra.mxu0 0.0
    %905 = vmatprep.subr.mxu0 0.0
    %906 = vmatpush1.msra.mxu0 0.0
    %907 = vmatprep.subr.mxu0 0.0
    %908 = vmatpush1.msra.mxu0 0.0
    %909 = vmatprep.subr.mxu0 0.0
    %910 = vmatpush1.msra.mxu0 0.0
    %911 = vmatprep.subr.mxu0 0.0
    %912 = vmatpush1.msra.mxu0 0.0
    %913 = vmatprep.subr.mxu0 0.0
    %914 = vmatpush1.msra.mxu0 0.0
    %915 = vmatprep.subr.mxu0 0.0
    %916 = vmatpush1.msra.mxu0 0.0
    %917 = vmatprep.subr.mxu0 0.0
    %918 = vmatpush1.msra.mxu0 0.0
    %919 = vmatprep.subr.mxu0 0.0
    %920 = vmatpush1.msra.mxu0 0.0
    %921 = vmatprep.subr.mxu0 0.0
    %922 = vmatpush1.msra.mxu0 0.0
    %923 = vmatprep.subr.mxu0 0.0
    %924 = vmatpush1.msra.mxu0 0.0
    %925 = vmatprep.subr.mxu0 0.0
    %926 = vmatpush1.msra.mxu0 0.0
    %927 = vmatprep.subr.mxu0 0.0
    %928 = vmatpush1.msra.mxu0 0.0
    %929 = vmatprep.subr.mxu0 0.0
    %930 = vmatpush1.msra.mxu0 0.0
    %931 = vmatprep.subr.mxu0 0.0
    %932 = vmatpush1.msra.mxu0 0.0
    %933 = vmatprep.subr.mxu0 0.0
    %934 = vmatpush1.msra.mxu0 0.0
    %935 = vmatprep.subr.mxu0 0.0
    %936 = vmatpush1.msra.mxu0 0.0
    %937 = vmatprep.subr.mxu0 0.0
    %938 = vmatpush1.msra.mxu0 0.0
    %939 = vmatprep.subr.mxu0 0.0
    %940 = vmatpush1.msra.mxu0 0.0
    %941 = vmatprep.subr.mxu0 0.0
    %942 = vmatpush1.msra.mxu0 0.0
    %943 = vmatprep.subr.mxu0 0.0
    %944 = vmatpush1.msra.mxu0 0.0
    %945 = vmatprep.subr.mxu0 0.0
    %946 = vmatpush1.msra.mxu0 0.0
    %947 = vmatprep.subr.mxu0 0.0
    %948 = vmatpush1.msra.mxu0 0.0
    %949 = vmatprep.subr.mxu0 0.0
    %950 = vmatpush1.msra.mxu0 0.0
    %951 = vmatprep.subr.mxu0 0.0
    %952 = vmatpush1.msra.mxu0 0.0
    %953 = vmatprep.subr.mxu0 0.0
    %954 = vmatpush1.msra.mxu0 0.0
    %955 = vmatprep.subr.mxu0 0.0
    %956 = vmatpush1.msra.mxu0 0.0
    %957 = vmatprep.subr.mxu0 0.0
    %958 = vmatpush1.msra.mxu0 0.0
    %959 = vmatprep.subr.mxu0 0.0
    %960 = vmatpush1.msra.mxu0 0.0
    %961 = vmatprep.subr.mxu0 0.0
    %962 = vmatpush1.msra.mxu0 0.0
    %963 = vmatprep.mubr.f32.mxu0 0.0
    %964 = vmatmul.mubr.f32.gmra.mrb[0].mxu0 %v897
    %v965 = vpop.f32.mrb[0].mxu0
    %v966 = vadd.f32 0.0, %v965
    %v967 = vpop.f32.mrb[0].mxu0
    %968 = vdwg.mxu0
    %v969 = vpack.c.bf16 %v966, %v966
    %v970 = vld [vmem:[%s18] sm:$0xf]
    %v971 = vld [vmem:[%s18 + $0x4] sm:$0xf]
    %v972 = vld [vmem:[%s18 + $0x8] sm:$0xf]
    %v973 = vld [vmem:[%s18 + $0xc] sm:$0xf]
    %v974 = vld [vmem:[%s18 + $0x10] sm:$0xf]
    %v975 = vld [vmem:[%s18 + $0x14] sm:$0xf]
    %v976 = vld [vmem:[%s18 + $0x18] sm:$0xf]
    %v977 = vld [vmem:[%s18 + $0x1c] sm:$0xf]
    %v978 = vld [vmem:[%s18 + $0x20] sm:$0xf]
    %v979 = vld [vmem:[%s18 + $0x24] sm:$0xf]
    %v980 = vld [vmem:[%s18 + $0x28] sm:$0xf]
    %v981 = vld [vmem:[%s18 + $0x2c] sm:$0xf]
    %v982 = vld [vmem:[%s18 + $0x30] sm:$0xf]
    %v983 = vld [vmem:[%s18 + $0x34] sm:$0xf]
    %v984 = vld [vmem:[%s18 + $0x38] sm:$0xf]
    %v985 = vld [vmem:[%s18 + $0x3c] sm:$0xf]
    %v986 = vld [vmem:[%s19] sm:$0x1]
    %v988 = vlaneseq
    %v989 = vshrl.u32 %v988, 7
    %v990 = vsub.s32 0, %v989
    %v991 = vrot.slane %v986, %v990
    %v1009 = vunpack.c.l.b16 %v970
    %v1010 = vunpack.c.l.b16 %v971
    %v1011 = vunpack.c.l.b16 %v972
    %v1012 = vunpack.c.l.b16 %v973
    %v1013 = vunpack.c.l.b16 %v974
    %v1014 = vunpack.c.l.b16 %v975
    %v1015 = vunpack.c.l.b16 %v976
    %v1016 = vunpack.c.l.b16 %v977
    %v1017 = vunpack.c.l.b16 %v978
    %v1018 = vunpack.c.l.b16 %v979
    %v1019 = vunpack.c.l.b16 %v980
    %v1020 = vunpack.c.l.b16 %v981
    %v1021 = vunpack.c.l.b16 %v982
    %v1022 = vunpack.c.l.b16 %v983
    %v1023 = vunpack.c.l.b16 %v984
    %v1024 = vunpack.c.l.b16 %v985
    %v1025 = vpack.c.b16 %v1010, %v1009
    %v1026 = vpack.c.b16 %v1012, %v1011
    %v1027 = vpack.c.b16 %v1014, %v1013
    %v1028 = vpack.c.b16 %v1016, %v1015
    %v1029 = vpack.c.b16 %v1018, %v1017
    %v1030 = vpack.c.b16 %v1020, %v1019
    %v1031 = vpack.c.b16 %v1022, %v1021
    %v1032 = vpack.c.b16 %v1024, %v1023
    %1041 = vmatprep.subr.bf16.mxu0 0
    %1042 = vmatpush1.bf16.msra.mxu0 %v1025
    %1043 = vmatprep.subr.bf16.mxu0 0
    %1044 = vmatpush1.bf16.msra.mxu0 %v1026
    %1045 = vmatprep.subr.bf16.mxu0 0
    %1046 = vmatpush1.bf16.msra.mxu0 %v1027
    %1047 = vmatprep.subr.bf16.mxu0 0
    %1048 = vmatpush1.bf16.msra.mxu0 %v1028
    %1049 = vmatprep.subr.bf16.mxu0 0
    %1050 = vmatpush1.bf16.msra.mxu0 %v1029
    %1051 = vmatprep.subr.bf16.mxu0 0
    %1052 = vmatpush1.bf16.msra.mxu0 %v1030
    %1053 = vmatprep.subr.bf16.mxu0 0
    %1054 = vmatpush1.bf16.msra.mxu0 %v1031
    %1055 = vmatprep.subr.bf16.mxu0 0
    %1056 = vmatpush1.bf16.msra.mxu0 %v1032
    %1057 = vmatprep.subr.bf16.mxu0 0
    %1058 = vmatpush1.bf16.msra.mxu0 0
    %1059 = vmatprep.subr.bf16.mxu0 0
    %1060 = vmatpush1.bf16.msra.mxu0 0
    %1061 = vmatprep.subr.bf16.mxu0 0
    %1062 = vmatpush1.bf16.msra.mxu0 0
    %1063 = vmatprep.subr.bf16.mxu0 0
    %1064 = vmatpush1.bf16.msra.mxu0 0
    %1065 = vmatprep.subr.bf16.mxu0 0
    %1066 = vmatpush1.bf16.msra.mxu0 0
    %1067 = vmatprep.subr.bf16.mxu0 0
    %1068 = vmatpush1.bf16.msra.mxu0 0
    %1069 = vmatprep.subr.bf16.mxu0 0
    %1070 = vmatpush1.bf16.msra.mxu0 0
    %1071 = vmatprep.subr.bf16.mxu0 0
    %1072 = vmatpush1.bf16.msra.mxu0 0
    %1073 = vmatprep.mubr.bf16.mxu0 0
    %1074 = vmatmul.mubr.bf16.gmra.mrb[0].mxu0 %v969
    %v1075 = vpop.f32.mrb[0].mxu0
    %v1076 = vadd.f32 %v991, %v1075
    %v1077 = vpop.f32.mrb[0].mxu0
    %v1078 = vpop.f32.mrb[0].mxu0
    %v1079 = vpop.f32.mrb[0].mxu0
    %1080 = vdwg.mxu0
    %1081 = vst [vmem:[#allocation2] sm:$0x3] %v1076
    // Predicated region
    $region82: #{cnn_head2_forward.1} parent=1 // pred_check
      _
    $region83: #{cnn_head2_forward.1} parent=1 // pred_check_branch
      %1083 = sbr.rel (0) target = $region85
    $region84: #{cnn_head2_forward.1} parent=1 // pred_region
      %s1085 = ssub.s32 32, 32
      %1086 = vsyncadd [#allocation3], %s1085
      %s1088 = sshll.u32 [#allocation2], 4
      %s1089 = int_to_ptr.vmem [resolvable:$true] %s1088
      %1091 = dma.vmem_to_hbm [thread:$0]  %s1089, 32, %s20, [#allocation3]
    $region85: #{cnn_head2_forward.1} parent=1 // pred_fallthru
      _
    // Predicated region
    $region86: #{cnn_head2_forward.1} parent=1 // pred_check
      _
    $region87: #{cnn_head2_forward.1} parent=1 // pred_check_branch
      %1093 = sbr.rel (0) target = $region89
    $region88: #{cnn_head2_forward.1} parent=1 // pred_region
      %1094 = dma.done [#allocation3], 32
    $region89: #{cnn_head2_forward.1} parent=1 // pred_fallthru
      _
    %1095 = vsyncpa [#allocation3], 1

</llo_original>
